<compile_context>
chip_gen: v6e
topology: v6e:2x2x1
jax: 0.10.0
libtpu: 0.0.40
codegen_flags: <defaults>
</compile_context>

<pallas_src>
import functools
import math

import jax
import jax.numpy as jnp
from jax.experimental import pallas as pl
from jax.experimental.pallas import tpu as pltpu


def channel_attention_kernel(h_ref, hs_ref, bg_ref,
                             wh_ref, whs_ref, wbg_ref, b_ref,
                             wpsi_ref, bpsi_ref,
                             out_ref):
    # Data tiles are (C, T): channels on sublanes, spatial on the 128-lane axis.
    h = h_ref[...]           # (Ch,  T)
    hs = hs_ref[...]         # (Chs, T)
    bg = bg_ref[...]         # (Cbg, T)

    # Three folded 1x1-conv+BN branches, summed (biases pre-summed in the wrapper), ReLU.
    s = jnp.dot(wh_ref[...], h, preferred_element_type=jnp.float32)
    s = s + jnp.dot(whs_ref[...], hs, preferred_element_type=jnp.float32)
    s = s + jnp.dot(wbg_ref[...], bg, preferred_element_type=jnp.float32)
    s = jnp.maximum(s + b_ref[...], 0.0)                                      # (F_int, T)

    # psi: F_int -> 1 projection as VPU multiply + sublane reduce (avoids a 1-lane MXU result),
    # sigmoid via EUP exp + reciprocal (exact, keeps 1e-5 agreement with the reference).
    psi = jnp.sum(s * wpsi_ref[...], axis=0, keepdims=True) + bpsi_ref[...]   # (1, T)
    gate = pl.reciprocal(1.0 + jnp.exp(-psi), approx=False)                   # sigmoid

    out_ref[...] = hs * gate                                                  # broadcast over channels


def _fold_bn(w, b, gamma, beta, running_mean, running_var, eps=1e-5):
    """Fold inference-mode BatchNorm into a 1x1 conv given as (Cout, Cin) weight + (Cout,) bias."""
    scale = gamma / jnp.sqrt(running_var + eps)      # (Cout,)
    w_f = w * scale[:, None]
    b_f = (b - running_mean) * scale + beta
    return w_f, b_f


@functools.partial(jax.jit, static_argnames=("tile_hw",))
def channel_attention(h, hs, bg, params, tile_hw=16384):
    """h, hs, bg: NCHW float32 arrays. Returns hs * psi in NCHW."""
    N, Ch, H, W = h.shape
    Chs = hs.shape[1]
    Cbg = bg.shape[1]
    F_int = params["wh"].shape[0]
    HW = H * W

    # NCHW -> (N, C, H*W): a free reshape (no transpose, no extra HBM pass).
    h2 = h.reshape(N, Ch, HW).astype(jnp.float32)
    hs2 = hs.reshape(N, Chs, HW).astype(jnp.float32)
    bg2 = bg.reshape(N, Cbg, HW).astype(jnp.float32)

    # Tile the lane-dense spatial axis. Only pad if the tile does not divide H*W.
    hw_128 = ((HW + 127) // 128) * 128
    t = min(tile_hw, hw_128)
    hw_p = ((HW + t - 1) // t) * t
    pad = hw_p - HW
    if pad:
        h2 = jnp.pad(h2, ((0, 0), (0, 0), (0, pad)))
        hs2 = jnp.pad(hs2, ((0, 0), (0, 0), (0, pad)))
        bg2 = jnp.pad(bg2, ((0, 0), (0, 0), (0, pad)))

    # Fold BN (inference mode) into the conv weights; pre-sum the three branch biases.
    wh_f, bh_f = _fold_bn(params["wh"], params["bh"], params["bn_h_g"], params["bn_h_b"],
                          params["bn_h_m"], params["bn_h_v"])
    whs_f, bhs_f = _fold_bn(params["whs"], params["bhs"], params["bn_hs_g"], params["bn_hs_b"],
                            params["bn_hs_m"], params["bn_hs_v"])
    wbg_f, bbg_f = _fold_bn(params["wbg"], params["bbg"], params["bn_bg_g"], params["bn_bg_b"],
                            params["bn_bg_m"], params["bn_bg_v"])
    wpsi_f, bpsi_f = _fold_bn(params["wpsi"], params["bpsi"], params["bn_p_g"], params["bn_p_b"],
                              params["bn_p_m"], params["bn_p_v"])

    b_sum = (bh_f + bhs_f + bbg_f).reshape(F_int, 1)     # (F_int, 1)
    wpsi_col = wpsi_f.reshape(F_int, 1)                  # (F_int, 1)
    bpsi_c = bpsi_f.reshape(1, 1)                        # (1, 1)

    grid = (N, hw_p // t)

    def data_spec(c):
        # Squeeze the batch dim; kernel sees (C, T) with T lane-dense.
        return pl.BlockSpec((None, c, t), lambda n, j: (n, 0, j))

    def full_spec(shape):
        return pl.BlockSpec(shape, lambda n, j: (0,) * len(shape))

    out = pl.pallas_call(
        channel_attention_kernel,
        out_shape=jax.ShapeDtypeStruct((N, Chs, hw_p), jnp.float32),
        grid_spec=pltpu.PrefetchScalarGridSpec(
            num_scalar_prefetch=0,
            grid=grid,
            in_specs=[
                data_spec(Ch),               # h   (N, Ch,  hw_p)
                data_spec(Chs),              # hs  (N, Chs, hw_p)
                data_spec(Cbg),              # bg  (N, Cbg, hw_p)
                full_spec((F_int, Ch)),      # wh^T  (folded)
                full_spec((F_int, Chs)),     # whs^T (folded)
                full_spec((F_int, Cbg)),     # wbg^T (folded)
                full_spec((F_int, 1)),       # summed branch bias
                full_spec((F_int, 1)),       # wpsi (folded, as column)
                full_spec((1, 1)),           # bpsi (folded)
            ],
            out_specs=pl.BlockSpec((None, Chs, t), lambda n, j: (n, 0, j)),
        ),
        compiler_params=pltpu.CompilerParams(
            dimension_semantics=("parallel", "parallel")),
    )(h2, hs2, bg2, wh_f, whs_f, wbg_f, b_sum, wpsi_col, bpsi_c)

    out = out[:, :, :HW].reshape(N, Chs, H, W)           # free reshape, stays NCHW
    return out


def init_params(key, F_h, F_hs, F_bg, F_int):
    """Deterministic parameter init matching the shapes in Channel_Attention.__init__.
    Conv weights stored PyTorch-style as (Cout, Cin) for 1x1 convs."""
    ks = jax.random.split(key, 4)

    def conv_init(k, cin, cout):
        kw, kb = jax.random.split(k)
        bound = 1.0 / math.sqrt(cin)
        w = jax.random.uniform(kw, (cout, cin), jnp.float32, -bound, bound)
        b = jax.random.uniform(kb, (cout,), jnp.float32, -bound, bound)
        return w, b

    wh, bh = conv_init(ks[0], F_h, F_int)
    whs, bhs = conv_init(ks[1], F_hs, F_int)
    wbg, bbg = conv_init(ks[2], F_bg, F_int)
    wpsi, bpsi = conv_init(ks[3], F_int, 1)

    def bn_init(c):
        return (jnp.ones((c,), jnp.float32), jnp.zeros((c,), jnp.float32),
                jnp.zeros((c,), jnp.float32), jnp.ones((c,), jnp.float32))

    bn_h_g, bn_h_b, bn_h_m, bn_h_v = bn_init(F_int)
    bn_hs_g, bn_hs_b, bn_hs_m, bn_hs_v = bn_init(F_int)
    bn_bg_g, bn_bg_b, bn_bg_m, bn_bg_v = bn_init(F_int)
    bn_p_g, bn_p_b, bn_p_m, bn_p_v = bn_init(1)

    return dict(
        wh=wh, bh=bh, whs=whs, bhs=bhs, wbg=wbg, bbg=bbg, wpsi=wpsi, bpsi=bpsi,
        bn_h_g=bn_h_g, bn_h_b=bn_h_b, bn_h_m=bn_h_m, bn_h_v=bn_h_v,
        bn_hs_g=bn_hs_g, bn_hs_b=bn_hs_b, bn_hs_m=bn_hs_m, bn_hs_v=bn_hs_v,
        bn_bg_g=bn_bg_g, bn_bg_b=bn_bg_b, bn_bg_m=bn_bg_m, bn_bg_v=bn_bg_v,
        bn_p_g=bn_p_g, bn_p_b=bn_p_b, bn_p_m=bn_p_m, bn_p_v=bn_p_v,
    )


def reference(h, hs, bg, params):
    """Pure-JAX reference (inference-mode BN), all in NCHW."""
    eps = 1e-5

    def branch(x, w, b, g, be, m, v):
        y = jnp.einsum('oc,nchw->nohw', w, x) + b[None, :, None, None]
        scale = g / jnp.sqrt(v + eps)
        return (y - m[None, :, None, None]) * scale[None, :, None, None] + be[None, :, None, None]

    h1 = branch(h, params["wh"], params["bh"], params["bn_h_g"], params["bn_h_b"],
                params["bn_h_m"], params["bn_h_v"])
    hs1 = branch(hs, params["whs"], params["bhs"], params["bn_hs_g"], params["bn_hs_b"],
                 params["bn_hs_m"], params["bn_hs_v"])
    bg1 = branch(bg, params["wbg"], params["bbg"], params["bn_bg_g"], params["bn_bg_b"],
                 params["bn_bg_m"], params["bn_bg_v"])
    s = jax.nn.relu(h1 + hs1 + bg1)
    psi = branch(s, params["wpsi"], params["bpsi"], params["bn_p_g"], params["bn_p_b"],
                 params["bn_p_m"], params["bn_p_v"])
    psi = 1.0 / (1.0 + jnp.exp(-psi))
    return hs * psi


if __name__ == "__main__":
    key = jax.random.PRNGKey(0)
    k_h, k_hs, k_bg, k_p = jax.random.split(key, 4)

    N, H, W = 2, 16, 16
    F_h, F_hs, F_bg, F_int = 4, 4, 4, 8

    h = jax.random.normal(k_h, (N, F_h, H, W), jnp.float32)
    hs = jax.random.normal(k_hs, (N, F_hs, H, W), jnp.float32)
    bg = jax.random.normal(k_bg, (N, F_bg, H, W), jnp.float32)

    params = init_params(k_p, F_h, F_hs, F_bg, F_int)

    out = channel_attention(h, hs, bg, params)
    out = jax.block_until_ready(out)

    ref = reference(h, hs, bg, params)
    assert out.shape == (N, F_hs, H, W)
    assert jnp.allclose(out, ref, atol=1e-5, rtol=1e-5)

    print("KERNEL_OK")
</pallas_src>

<mosaic_0001>
module attributes {stable_mosaic.version = 11 : i64} {
  func.func @channel_attention_kernel(%arg0: i32, %arg1: i32, %arg2: memref<1x4x256xf32, #tpu.memory_space<vmem>>, %arg3: memref<1x4x256xf32, #tpu.memory_space<vmem>>, %arg4: memref<1x4x256xf32, #tpu.memory_space<vmem>>, %arg5: memref<8x4xf32, #tpu.memory_space<vmem>>, %arg6: memref<8x4xf32, #tpu.memory_space<vmem>>, %arg7: memref<8x4xf32, #tpu.memory_space<vmem>>, %arg8: memref<8x1xf32, #tpu.memory_space<vmem>>, %arg9: memref<8x1xf32, #tpu.memory_space<vmem>>, %arg10: memref<1x1xf32, #tpu.memory_space<vmem>>, %arg11: memref<1x4x256xf32, #tpu.memory_space<vmem>>) attributes {dimension_semantics = [#tpu.dimension_semantics<parallel>, #tpu.dimension_semantics<parallel>], iteration_bounds = array<i64: 2, 1>, scalar_prefetch = 0 : i64, scratch_operands = 0 : i64, tpu.core_type = #tpu.core_type<tc>, window_params = [{transform_indices = @transform_0, window_bounds = array<i64: 1, 4, 256>}, {transform_indices = @transform_1, window_bounds = array<i64: 1, 4, 256>}, {transform_indices = @transform_2, window_bounds = array<i64: 1, 4, 256>}, {pipeline_mode = #tpu.pipeline_mode<synchronous>, transform_indices = @transform_3, window_bounds = array<i64: 8, 4>}, {pipeline_mode = #tpu.pipeline_mode<synchronous>, transform_indices = @transform_4, window_bounds = array<i64: 8, 4>}, {pipeline_mode = #tpu.pipeline_mode<synchronous>, transform_indices = @transform_5, window_bounds = array<i64: 8, 4>}, {pipeline_mode = #tpu.pipeline_mode<synchronous>, transform_indices = @transform_6, window_bounds = array<i64: 8, 1>}, {pipeline_mode = #tpu.pipeline_mode<synchronous>, transform_indices = @transform_7, window_bounds = array<i64: 8, 1>}, {pipeline_mode = #tpu.pipeline_mode<synchronous>, transform_indices = @transform_8, window_bounds = array<i64: 1, 1>}, {transform_indices = @transform_9, window_bounds = array<i64: 1, 4, 256>}]} {
    %c0 = arith.constant 0 : index
    %c0_0 = arith.constant 0 : index
    %c0_1 = arith.constant 0 : index
    %0 = vector.load %arg2[%c0, %c0_0, %c0_1] : memref<1x4x256xf32, #tpu.memory_space<vmem>>, vector<1x4x256xf32>
    %1 = vector.shape_cast %0 : vector<1x4x256xf32> to vector<4x256xf32>
    %c0_2 = arith.constant 0 : index
    %c0_3 = arith.constant 0 : index
    %c0_4 = arith.constant 0 : index
    %2 = vector.load %arg3[%c0_2, %c0_3, %c0_4] : memref<1x4x256xf32, #tpu.memory_space<vmem>>, vector<1x4x256xf32>
    %3 = vector.shape_cast %2 : vector<1x4x256xf32> to vector<4x256xf32>
    %c0_5 = arith.constant 0 : index
    %c0_6 = arith.constant 0 : index
    %c0_7 = arith.constant 0 : index
    %4 = vector.load %arg4[%c0_5, %c0_6, %c0_7] : memref<1x4x256xf32, #tpu.memory_space<vmem>>, vector<1x4x256xf32>
    %5 = vector.shape_cast %4 : vector<1x4x256xf32> to vector<4x256xf32>
    %c0_8 = arith.constant 0 : index
    %c0_9 = arith.constant 0 : index
    %6 = vector.load %arg5[%c0_8, %c0_9] : memref<8x4xf32, #tpu.memory_space<vmem>>, vector<8x4xf32>
    %cst = arith.constant dense<0.000000e+00> : vector<8x256xf32>
    %7 = tpu.matmul %6, %1, %cst {dimension_numbers = #tpu.dot_dimension_numbers<[1], [0], [0], [1], [0, 0, 1, 1], [], []>} : vector<8x4xf32>, vector<4x256xf32>, vector<8x256xf32> -> vector<8x256xf32>
    %c0_10 = arith.constant 0 : index
    %c0_11 = arith.constant 0 : index
    %8 = vector.load %arg6[%c0_10, %c0_11] : memref<8x4xf32, #tpu.memory_space<vmem>>, vector<8x4xf32>
    %cst_12 = arith.constant dense<0.000000e+00> : vector<8x256xf32>
    %9 = tpu.matmul %8, %3, %cst_12 {dimension_numbers = #tpu.dot_dimension_numbers<[1], [0], [0], [1], [0, 0, 1, 1], [], []>} : vector<8x4xf32>, vector<4x256xf32>, vector<8x256xf32> -> vector<8x256xf32>
    %10 = arith.addf %7, %9 : vector<8x256xf32>
    %c0_13 = arith.constant 0 : index
    %c0_14 = arith.constant 0 : index
    %11 = vector.load %arg7[%c0_13, %c0_14] : memref<8x4xf32, #tpu.memory_space<vmem>>, vector<8x4xf32>
    %cst_15 = arith.constant dense<0.000000e+00> : vector<8x256xf32>
    %12 = tpu.matmul %11, %5, %cst_15 {dimension_numbers = #tpu.dot_dimension_numbers<[1], [0], [0], [1], [0, 0, 1, 1], [], []>} : vector<8x4xf32>, vector<4x256xf32>, vector<8x256xf32> -> vector<8x256xf32>
    %13 = arith.addf %10, %12 : vector<8x256xf32>
    %c0_16 = arith.constant 0 : index
    %c0_17 = arith.constant 0 : index
    %14 = vector.load %arg8[%c0_16, %c0_17] : memref<8x1xf32, #tpu.memory_space<vmem>>, vector<8x1xf32>
    %15 = vector.broadcast %14 : vector<8x1xf32> to vector<8x256xf32>
    %16 = arith.addf %13, %15 : vector<8x256xf32>
    %cst_18 = arith.constant 0.000000e+00 : f32
    %17 = vector.broadcast %cst_18 : f32 to vector<8x256xf32>
    %18 = arith.maximumf %16, %17 : vector<8x256xf32>
    %c0_19 = arith.constant 0 : index
    %c0_20 = arith.constant 0 : index
    %19 = vector.load %arg9[%c0_19, %c0_20] : memref<8x1xf32, #tpu.memory_space<vmem>>, vector<8x1xf32>
    %20 = vector.broadcast %19 : vector<8x1xf32> to vector<8x256xf32>
    %21 = arith.mulf %18, %20 : vector<8x256xf32>
    %cst_21 = arith.constant dense<0.000000e+00> : vector<256xf32>
    %22 = vector.multi_reduction <add>, %21, %cst_21 [0] : vector<8x256xf32> to vector<256xf32>
    %23 = vector.shape_cast %22 : vector<256xf32> to vector<1x256xf32>
    %c0_22 = arith.constant 0 : index
    %c0_23 = arith.constant 0 : index
    %24 = vector.load %arg10[%c0_22, %c0_23] : memref<1x1xf32, #tpu.memory_space<vmem>>, vector<1x1xf32>
    %25 = vector.broadcast %24 : vector<1x1xf32> to vector<1x256xf32>
    %26 = arith.addf %23, %25 : vector<1x256xf32>
    %cst_24 = arith.constant 0.000000e+00 : f32
    %27 = vector.broadcast %cst_24 : f32 to vector<1x256xf32>
    %28 = arith.subf %27, %26 : vector<1x256xf32>
    %29 = math.exp %28 : vector<1x256xf32>
    %cst_25 = arith.constant 1.000000e+00 : f32
    %30 = vector.broadcast %cst_25 : f32 to vector<1x256xf32>
    %31 = arith.addf %30, %29 : vector<1x256xf32>
    %32 = tpu.reciprocal %31 : vector<1x256xf32> -> vector<1x256xf32>
    %33 = vector.broadcast %32 : vector<1x256xf32> to vector<4x256xf32>
    %34 = arith.mulf %3, %33 : vector<4x256xf32>
    %c0_26 = arith.constant 0 : index
    %c0_27 = arith.constant 0 : index
    %c0_28 = arith.constant 0 : index
    %35 = vector.load %arg11[%c0_26, %c0_27, %c0_28] : memref<1x4x256xf32, #tpu.memory_space<vmem>>, vector<1x4x256xf32>
    %36 = vector.shape_cast %35 : vector<1x4x256xf32> to vector<4x256xf32>
    %37 = vector.shape_cast %34 : vector<4x256xf32> to vector<1x4x256xf32>
    tpu.vector_store %arg11[%c0_26, %c0_27, %c0_28], %37 {strides = array<i32>} : memref<1x4x256xf32, #tpu.memory_space<vmem>>, vector<1x4x256xf32>,
    return
  }
  func.func @transform_0(%arg0: i32, %arg1: i32) -> (i32, i32, i32) {
    %c0_i32 = arith.constant 0 : i32
    %c0_i32_0 = arith.constant 0 : i32
    return %arg0, %c0_i32, %arg1 : i32, i32, i32
  }
  func.func @transform_1(%arg0: i32, %arg1: i32) -> (i32, i32, i32) {
    %c0_i32 = arith.constant 0 : i32
    %c0_i32_0 = arith.constant 0 : i32
    return %arg0, %c0_i32, %arg1 : i32, i32, i32
  }
  func.func @transform_2(%arg0: i32, %arg1: i32) -> (i32, i32, i32) {
    %c0_i32 = arith.constant 0 : i32
    %c0_i32_0 = arith.constant 0 : i32
    return %arg0, %c0_i32, %arg1 : i32, i32, i32
  }
  func.func @transform_3(%arg0: i32, %arg1: i32) -> (i32, i32) {
    %c0_i32 = arith.constant 0 : i32
    %c0_i32_0 = arith.constant 0 : i32
    %c0_i32_1 = arith.constant 0 : i32
    return %c0_i32, %c0_i32_0 : i32, i32
  }
  func.func @transform_4(%arg0: i32, %arg1: i32) -> (i32, i32) {
    %c0_i32 = arith.constant 0 : i32
    %c0_i32_0 = arith.constant 0 : i32
    %c0_i32_1 = arith.constant 0 : i32
    return %c0_i32, %c0_i32_0 : i32, i32
  }
  func.func @transform_5(%arg0: i32, %arg1: i32) -> (i32, i32) {
    %c0_i32 = arith.constant 0 : i32
    %c0_i32_0 = arith.constant 0 : i32
    %c0_i32_1 = arith.constant 0 : i32
    return %c0_i32, %c0_i32_0 : i32, i32
  }
  func.func @transform_6(%arg0: i32, %arg1: i32) -> (i32, i32) {
    %c0_i32 = arith.constant 0 : i32
    %c0_i32_0 = arith.constant 0 : i32
    %c0_i32_1 = arith.constant 0 : i32
    return %c0_i32, %c0_i32_0 : i32, i32
  }
  func.func @transform_7(%arg0: i32, %arg1: i32) -> (i32, i32) {
    %c0_i32 = arith.constant 0 : i32
    %c0_i32_0 = arith.constant 0 : i32
    %c0_i32_1 = arith.constant 0 : i32
    return %c0_i32, %c0_i32_0 : i32, i32
  }
  func.func @transform_8(%arg0: i32, %arg1: i32) -> (i32, i32) {
    %c0_i32 = arith.constant 0 : i32
    %c0_i32_0 = arith.constant 0 : i32
    %c0_i32_1 = arith.constant 0 : i32
    return %c0_i32, %c0_i32_0 : i32, i32
  }
  func.func @transform_9(%arg0: i32, %arg1: i32) -> (i32, i32, i32) {
    %c0_i32 = arith.constant 0 : i32
    %c0_i32_0 = arith.constant 0 : i32
    return %arg0, %c0_i32, %arg1 : i32, i32, i32
  }
}

</mosaic_0001>

<llo_original>
// kernel: channel_attention.1
$region0: #{channel_attention.1}
  #allocation0 [shape = 'u32[]', space=smem, size = 0x4, offset = 0x4, fixed_abs, tag = 'smem constant byte address 0x4 - core index']
  #allocation1 [shape = 'u32[144,128]{1,0:T(1,128)}', space=vmem, size = 0x12000, scoped, tag = 'internal scratch']
  #allocation2 [shape = 'f32[1,1]{1,0:T(1,128)S(1)}', space=vmem, size = 0x200, scoped, tag = 'scoped memory for channel_attention.1']
  %s0 = inlined_call_operand.vmem [shape: f32[2,4,256], index: 0, kind: input, shape index: {}]
  %s1 = inlined_call_operand.vmem [shape: f32[2,4,256], index: 1, kind: input, shape index: {}]
  %s2 = inlined_call_operand.vmem [shape: f32[2,4,256], index: 2, kind: input, shape index: {}]
  %s3 = inlined_call_operand.vmem [shape: f32[8,4], index: 3, kind: input, shape index: {}]
  %s4 = inlined_call_operand.vmem [shape: f32[8,4], index: 4, kind: input, shape index: {}]
  %s5 = inlined_call_operand.vmem [shape: f32[8,4], index: 5, kind: input, shape index: {}]
  %s6 = inlined_call_operand.vmem [shape: f32[8,1], index: 6, kind: input, shape index: {}]
  %s7 = inlined_call_operand.vmem [shape: f32[8,1], index: 7, kind: input, shape index: {}]
  %s8 = inlined_call_operand.<no memory space> [shape: f32[1,1], index: 8, kind: input, shape index: {}]
  %s9 = inlined_call_operand.vmem [shape: f32[2,4,256], index: 9, kind: output, shape index: {}]
  %s10 = sld [smem:[#allocation0]]
  $region69: #{channel_attention.1} parent=0
    _
  %s12 = ssub.s32 1, %s10
  %s13 = scalar_select 0, %s12, %s10
  %v14 = vstv %s8
  %15 = vst [vmem:[#allocation2] sm:$0x1] %v14
  loop: start=0, step=1, limit=4
  $region2: #{channel_attention.1} parent=0 // loop_pre_header
    _
  $region3: #{channel_attention.1} parent=0 // loop_header
    %s17 = sphi 0, %s21
    %p18 = scmp.ge.s32.totalorder %s17, 4
    %s24 = sphi 0, %s36
    %s25 = sphi 0, %s32
    %s26 = sphi 0, %s24
    %s27 = sphi 0, %s25
    %s28 = sphi 0, %s26
    %s29 = sphi 0, %s27
    %s41 = sphi 0, %s43
    %s44 = sphi 0, %s41
    %s45 = sphi 0, %s44
    %s61 = sphi 0, %s45
    %s69 = sphi 0, %s71
    %s72 = sphi 0, %s69
    %s73 = sphi 0, %s72
    %s89 = sphi 0, %s73
    %s97 = sphi 0, %s99
    %s100 = sphi 0, %s97
    %s101 = sphi 0, %s100
    %s117 = sphi 0, %s101
    %s121 = sphi 0, %s121
    %s123 = sphi 0, %s121
    %s124 = sphi 0, %s123
    %s138 = sphi 0, %s124
    %s142 = sphi 0, %s142
    %s144 = sphi 0, %s142
    %s145 = sphi 0, %s144
    %s159 = sphi 0, %s145
    %s163 = sphi 0, %s163
    %s165 = sphi 0, %s163
    %s166 = sphi 0, %s165
    %s180 = sphi 0, %s166
    %s184 = sphi 0, %s184
    %s186 = sphi 0, %s184
    %s187 = sphi 0, %s186
    %s201 = sphi 0, %s187
    %s205 = sphi 0, %s205
    %s207 = sphi 0, %s205
    %s208 = sphi 0, %s207
    %s222 = sphi 0, %s208
    %s226 = sphi 0, %s226
    %s228 = sphi 0, %s226
    %s229 = sphi 0, %s228
    %s243 = sphi 0, %s229
    %s251 = sphi 0, %s253
    %s254 = sphi 0, %s251
    %s255 = sphi 0, %s254
    %s271 = sphi 0, %s255
  $region4: #{channel_attention.1} parent=0 // loop_header_branch
    %20 = sbr.rel (%p18) target = $region8
  $region5: #{channel_attention.1} parent=0 // loop_body
    %s22 = ssub.s32 %s17, 1
    %s23 = ssub.s32 %s17, 2
    %s30 = sadd.s32 1, %s25
    %p31 = scmp.ge.s32.totalorder %s30, 1
    %s32 = scalar_select %p31, 0, %s30
    %s33 = sadd.s32 1, %s24
    %s34 = scalar_select %p31, %s33, %s24
    %p35 = scmp.ge.s32.totalorder %s34, 2
    %s36 = scalar_select %p35, 0, %s34
    %s37 = ssub.s32 %s24, %s36
    %s38 = ssub.s32 %s25, %s32
    %s39 = sor.u32 %s37, %s38
    %p40 = scmp.eq.s32.totalorder %s39, 0
    %s42 = sadd.s32 %s41, 1
    %s43 = scalar_select %p40, %s41, %s42
    %p46 = pneg %p40
    %p47 = scmp.eq.s32.totalorder %s17, 1
    %p48 = por %p46, %p47
    %p49 = scmp.ne.s32.totalorder %s41, %s44
    %p50 = scmp.eq.s32.totalorder %s17, 0
    %p51 = por %p49, %p50
    %p52 = scmp.ne.s32.totalorder %s41, %s44
    %p53 = scmp.eq.s32.totalorder %s22, 1
    %p54 = por %p52, %p53
    %p55 = scmp.ne.s32.totalorder %s44, %s45
    %p56 = scmp.eq.s32.totalorder %s22, 0
    %p57 = por %p55, %p56
    %p58 = scmp.ne.s32.totalorder %s44, %s45
    %p59 = scmp.eq.s32.totalorder %s23, 1
    %p60 = por %p58, %p59
    %p62 = scmp.ne.s32.totalorder %s45, %s61
    %p63 = scmp.eq.s32.totalorder %s23, 0
    %p64 = por %p62, %p63
    %s65 = ssub.s32 %s24, %s36
    %s66 = ssub.s32 %s25, %s32
    %s67 = sor.u32 %s65, %s66
    %p68 = scmp.eq.s32.totalorder %s67, 0
    %s70 = sadd.s32 %s69, 1
    %s71 = scalar_select %p68, %s69, %s70
    %p74 = pneg %p68
    %p75 = scmp.eq.s32.totalorder %s17, 1
    %p76 = por %p74, %p75
    %p77 = scmp.ne.s32.totalorder %s69, %s72
    %p78 = scmp.eq.s32.totalorder %s17, 0
    %p79 = por %p77, %p78
    %p80 = scmp.ne.s32.totalorder %s69, %s72
    %p81 = scmp.eq.s32.totalorder %s22, 1
    %p82 = por %p80, %p81
    %p83 = scmp.ne.s32.totalorder %s72, %s73
    %p84 = scmp.eq.s32.totalorder %s22, 0
    %p85 = por %p83, %p84
    %p86 = scmp.ne.s32.totalorder %s72, %s73
    %p87 = scmp.eq.s32.totalorder %s23, 1
    %p88 = por %p86, %p87
    %p90 = scmp.ne.s32.totalorder %s73, %s89
    %p91 = scmp.eq.s32.totalorder %s23, 0
    %p92 = por %p90, %p91
    %s93 = ssub.s32 %s24, %s36
    %s94 = ssub.s32 %s25, %s32
    %s95 = sor.u32 %s93, %s94
    %p96 = scmp.eq.s32.totalorder %s95, 0
    %s98 = sadd.s32 %s97, 1
    %s99 = scalar_select %p96, %s97, %s98
    %p102 = pneg %p96
    %p103 = scmp.eq.s32.totalorder %s17, 1
    %p104 = por %p102, %p103
    %p105 = scmp.ne.s32.totalorder %s97, %s100
    %p106 = scmp.eq.s32.totalorder %s17, 0
    %p107 = por %p105, %p106
    %p108 = scmp.ne.s32.totalorder %s97, %s100
    %p109 = scmp.eq.s32.totalorder %s22, 1
    %p110 = por %p108, %p109
    %p111 = scmp.ne.s32.totalorder %s100, %s101
    %p112 = scmp.eq.s32.totalorder %s22, 0
    %p113 = por %p111, %p112
    %p114 = scmp.ne.s32.totalorder %s100, %s101
    %p115 = scmp.eq.s32.totalorder %s23, 1
    %p116 = por %p114, %p115
    %p118 = scmp.ne.s32.totalorder %s101, %s117
    %p119 = scmp.eq.s32.totalorder %s23, 0
    %p120 = por %p118, %p119
    %s122 = sadd.s32 %s121, 1
    %p125 = scmp.eq.s32.totalorder %s17, 1
    %p126 = scmp.ne.s32.totalorder %s121, %s123
    %p127 = scmp.eq.s32.totalorder %s17, 0
    %p128 = por %p126, %p127
    %p129 = scmp.ne.s32.totalorder %s121, %s123
    %p130 = scmp.eq.s32.totalorder %s22, 1
    %p131 = por %p129, %p130
    %p132 = scmp.ne.s32.totalorder %s123, %s124
    %p133 = scmp.eq.s32.totalorder %s22, 0
    %p134 = por %p132, %p133
    %p135 = scmp.ne.s32.totalorder %s123, %s124
    %p136 = scmp.eq.s32.totalorder %s23, 1
    %p137 = por %p135, %p136
    %p139 = scmp.ne.s32.totalorder %s124, %s138
    %p140 = scmp.eq.s32.totalorder %s23, 0
    %p141 = por %p139, %p140
    %s143 = sadd.s32 %s142, 1
    %p146 = scmp.eq.s32.totalorder %s17, 1
    %p147 = scmp.ne.s32.totalorder %s142, %s144
    %p148 = scmp.eq.s32.totalorder %s17, 0
    %p149 = por %p147, %p148
    %p150 = scmp.ne.s32.totalorder %s142, %s144
    %p151 = scmp.eq.s32.totalorder %s22, 1
    %p152 = por %p150, %p151
    %p153 = scmp.ne.s32.totalorder %s144, %s145
    %p154 = scmp.eq.s32.totalorder %s22, 0
    %p155 = por %p153, %p154
    %p156 = scmp.ne.s32.totalorder %s144, %s145
    %p157 = scmp.eq.s32.totalorder %s23, 1
    %p158 = por %p156, %p157
    %p160 = scmp.ne.s32.totalorder %s145, %s159
    %p161 = scmp.eq.s32.totalorder %s23, 0
    %p162 = por %p160, %p161
    %s164 = sadd.s32 %s163, 1
    %p167 = scmp.eq.s32.totalorder %s17, 1
    %p168 = scmp.ne.s32.totalorder %s163, %s165
    %p169 = scmp.eq.s32.totalorder %s17, 0
    %p170 = por %p168, %p169
    %p171 = scmp.ne.s32.totalorder %s163, %s165
    %p172 = scmp.eq.s32.totalorder %s22, 1
    %p173 = por %p171, %p172
    %p174 = scmp.ne.s32.totalorder %s165, %s166
    %p175 = scmp.eq.s32.totalorder %s22, 0
    %p176 = por %p174, %p175
    %p177 = scmp.ne.s32.totalorder %s165, %s166
    %p178 = scmp.eq.s32.totalorder %s23, 1
    %p179 = por %p177, %p178
    %p181 = scmp.ne.s32.totalorder %s166, %s180
    %p182 = scmp.eq.s32.totalorder %s23, 0
    %p183 = por %p181, %p182
    %s185 = sadd.s32 %s184, 1
    %p188 = scmp.eq.s32.totalorder %s17, 1
    %p189 = scmp.ne.s32.totalorder %s184, %s186
    %p190 = scmp.eq.s32.totalorder %s17, 0
    %p191 = por %p189, %p190
    %p192 = scmp.ne.s32.totalorder %s184, %s186
    %p193 = scmp.eq.s32.totalorder %s22, 1
    %p194 = por %p192, %p193
    %p195 = scmp.ne.s32.totalorder %s186, %s187
    %p196 = scmp.eq.s32.totalorder %s22, 0
    %p197 = por %p195, %p196
    %p198 = scmp.ne.s32.totalorder %s186, %s187
    %p199 = scmp.eq.s32.totalorder %s23, 1
    %p200 = por %p198, %p199
    %p202 = scmp.ne.s32.totalorder %s187, %s201
    %p203 = scmp.eq.s32.totalorder %s23, 0
    %p204 = por %p202, %p203
    %s206 = sadd.s32 %s205, 1
    %p209 = scmp.eq.s32.totalorder %s17, 1
    %p210 = scmp.ne.s32.totalorder %s205, %s207
    %p211 = scmp.eq.s32.totalorder %s17, 0
    %p212 = por %p210, %p211
    %p213 = scmp.ne.s32.totalorder %s205, %s207
    %p214 = scmp.eq.s32.totalorder %s22, 1
    %p215 = por %p213, %p214
    %p216 = scmp.ne.s32.totalorder %s207, %s208
    %p217 = scmp.eq.s32.totalorder %s22, 0
    %p218 = por %p216, %p217
    %p219 = scmp.ne.s32.totalorder %s207, %s208
    %p220 = scmp.eq.s32.totalorder %s23, 1
    %p221 = por %p219, %p220
    %p223 = scmp.ne.s32.totalorder %s208, %s222
    %p224 = scmp.eq.s32.totalorder %s23, 0
    %p225 = por %p223, %p224
    %s227 = sadd.s32 %s226, 1
    %p230 = scmp.eq.s32.totalorder %s17, 1
    %p231 = scmp.ne.s32.totalorder %s226, %s228
    %p232 = scmp.eq.s32.totalorder %s17, 0
    %p233 = por %p231, %p232
    %p234 = scmp.ne.s32.totalorder %s226, %s228
    %p235 = scmp.eq.s32.totalorder %s22, 1
    %p236 = por %p234, %p235
    %p237 = scmp.ne.s32.totalorder %s228, %s229
    %p238 = scmp.eq.s32.totalorder %s22, 0
    %p239 = por %p237, %p238
    %p240 = scmp.ne.s32.totalorder %s228, %s229
    %p241 = scmp.eq.s32.totalorder %s23, 1
    %p242 = por %p240, %p241
    %p244 = scmp.ne.s32.totalorder %s229, %s243
    %p245 = scmp.eq.s32.totalorder %s23, 0
    %p246 = por %p244, %p245
    %s247 = ssub.s32 %s24, %s36
    %s248 = ssub.s32 %s25, %s32
    %s249 = sor.u32 %s247, %s248
    %p250 = scmp.eq.s32.totalorder %s249, 0
    %s252 = sadd.s32 %s251, 1
    %s253 = scalar_select %p250, %s251, %s252
    %p256 = pneg %p250
    %p257 = scmp.eq.s32.totalorder %s17, 1
    %p258 = por %p256, %p257
    %p259 = scmp.ne.s32.totalorder %s251, %s254
    %p260 = scmp.eq.s32.totalorder %s17, 0
    %p261 = por %p259, %p260
    %p262 = scmp.ne.s32.totalorder %s251, %s254
    %p263 = scmp.eq.s32.totalorder %s22, 1
    %p264 = por %p262, %p263
    %p265 = scmp.ne.s32.totalorder %s254, %s255
    %p266 = scmp.eq.s32.totalorder %s22, 0
    %p267 = por %p265, %p266
    %p268 = scmp.ne.s32.totalorder %s254, %s255
    %p269 = scmp.eq.s32.totalorder %s23, 1
    %p270 = por %p268, %p269
    %p272 = scmp.ne.s32.totalorder %s255, %s271
    %p273 = scmp.eq.s32.totalorder %s23, 0
    %p274 = por %p272, %p273
    %p275 = scmp.le.s32.totalorder 1, %s17
    %p276 = scmp.lt.s32.totalorder %s17, 3
    %p277 = pnand %p275, %p276
    %p278 = pneg %p277
    // Predicated region
    $region9: #{channel_attention.1} parent=5 // pred_check
      _
    $region10: #{channel_attention.1} parent=5 // pred_check_branch
      %280 = sbr.rel (%p277) target = $region12
    $region11: #{channel_attention.1} parent=5 // pred_region
      %s281 = ssub.s32 %s17, 1
      // Predicated region
      $region13: #{channel_attention.1} parent=11 // pred_check
        %p282 = pneg %p134
      $region14: #{channel_attention.1} parent=11 // pred_check_branch
        %284 = sbr.rel (%p282) target = $region16
      $region15: #{channel_attention.1} parent=11 // pred_region
        _
      $region16: #{channel_attention.1} parent=11 // pred_fallthru
        _
      // Predicated region
      $region17: #{channel_attention.1} parent=11 // pred_check
        %p285 = pneg %p155
      $region18: #{channel_attention.1} parent=11 // pred_check_branch
        %287 = sbr.rel (%p285) target = $region20
      $region19: #{channel_attention.1} parent=11 // pred_region
        _
      $region20: #{channel_attention.1} parent=11 // pred_fallthru
        _
      // Predicated region
      $region21: #{channel_attention.1} parent=11 // pred_check
        %p288 = pneg %p176
      $region22: #{channel_attention.1} parent=11 // pred_check_branch
        %290 = sbr.rel (%p288) target = $region24
      $region23: #{channel_attention.1} parent=11 // pred_region
        _
      $region24: #{channel_attention.1} parent=11 // pred_fallthru
        _
      // Predicated region
      $region25: #{channel_attention.1} parent=11 // pred_check
        %p291 = pneg %p197
      $region26: #{channel_attention.1} parent=11 // pred_check_branch
        %293 = sbr.rel (%p291) target = $region28
      $region27: #{channel_attention.1} parent=11 // pred_region
        _
      $region28: #{channel_attention.1} parent=11 // pred_fallthru
        _
      // Predicated region
      $region29: #{channel_attention.1} parent=11 // pred_check
        %p294 = pneg %p218
      $region30: #{channel_attention.1} parent=11 // pred_check_branch
        %296 = sbr.rel (%p294) target = $region32
      $region31: #{channel_attention.1} parent=11 // pred_region
        _
      $region32: #{channel_attention.1} parent=11 // pred_fallthru
        _
      // Predicated region
      $region33: #{channel_attention.1} parent=11 // pred_check
        %p297 = pneg %p239
      $region34: #{channel_attention.1} parent=11 // pred_check_branch
        %299 = sbr.rel (%p297) target = $region36
      $region35: #{channel_attention.1} parent=11 // pred_region
        _
      $region36: #{channel_attention.1} parent=11 // pred_fallthru
        _
    $region12: #{channel_attention.1} parent=5 // pred_fallthru
      _
    %p300 = scmp.lt.s32.totalorder %s17, 2
    // Predicated region
    $region37: #{channel_attention.1} parent=5 // pred_check
      %p301 = pneg %p300
    $region38: #{channel_attention.1} parent=5 // pred_check_branch
      %303 = sbr.rel (%p301) target = $region40
    $region39: #{channel_attention.1} parent=5 // pred_region
      // Predicated region
      $region41: #{channel_attention.1} parent=39 // pred_check
        %p304 = pneg %p51
      $region42: #{channel_attention.1} parent=39 // pred_check_branch
        %306 = sbr.rel (%p304) target = $region44
      $region43: #{channel_attention.1} parent=39 // pred_region
        %s307 = smul.u32 2, %s25
        %p308 = scmp.lt.s32.totalorder %s24, 1
        %s309 = scalar_select %p308, %s24, 1
        %p310 = scmp.lt.s32.totalorder %s307, 1
        %s311 = scalar_select %p310, %s307, 1
        %s312 = smul.addr %s309, 2
        %s313 = sadd.s32 %s311, %s312
        %s314 = smul.addr %s313, 4
        %s315 = scalar_lea.vmem %s0, %s314
        %s316 = smul.u32 2, %s25
      $region44: #{channel_attention.1} parent=39 // pred_fallthru
        _
      // Predicated region
      $region45: #{channel_attention.1} parent=39 // pred_check
        %p317 = pneg %p79
      $region46: #{channel_attention.1} parent=39 // pred_check_branch
        %319 = sbr.rel (%p317) target = $region48
      $region47: #{channel_attention.1} parent=39 // pred_region
        %s320 = smul.u32 2, %s25
        %p321 = scmp.lt.s32.totalorder %s24, 1
        %s322 = scalar_select %p321, %s24, 1
        %p323 = scmp.lt.s32.totalorder %s320, 1
        %s324 = scalar_select %p323, %s320, 1
        %s325 = smul.addr %s322, 2
        %s326 = sadd.s32 %s324, %s325
        %s327 = smul.addr %s326, 4
        %s328 = scalar_lea.vmem %s1, %s327
        %s329 = smul.u32 2, %s25
      $region48: #{channel_attention.1} parent=39 // pred_fallthru
        _
      // Predicated region
      $region49: #{channel_attention.1} parent=39 // pred_check
        %p330 = pneg %p107
      $region50: #{channel_attention.1} parent=39 // pred_check_branch
        %332 = sbr.rel (%p330) target = $region52
      $region51: #{channel_attention.1} parent=39 // pred_region
        %s333 = smul.u32 2, %s25
        %p334 = scmp.lt.s32.totalorder %s24, 1
        %s335 = scalar_select %p334, %s24, 1
        %p336 = scmp.lt.s32.totalorder %s333, 1
        %s337 = scalar_select %p336, %s333, 1
        %s338 = smul.addr %s335, 2
        %s339 = sadd.s32 %s337, %s338
        %s340 = smul.addr %s339, 4
        %s341 = scalar_lea.vmem %s2, %s340
        %s342 = smul.u32 2, %s25
      $region52: #{channel_attention.1} parent=39 // pred_fallthru
        _
    $region40: #{channel_attention.1} parent=5 // pred_fallthru
      _
    %p343 = scmp.le.s32.totalorder 1, %s17
    %p344 = scmp.lt.s32.totalorder %s17, 3
    %p345 = pnand %p343, %p344
    %p346 = pneg %p345
    // Predicated region
    $region53: #{channel_attention.1} parent=5 // pred_check
      _
    $region54: #{channel_attention.1} parent=5 // pred_check_branch
      %348 = sbr.rel (%p345) target = $region56
    $region55: #{channel_attention.1} parent=5 // pred_region
      %s349 = ssub.s32 %s17, 1
      %s350 = smul.u32 2, %s27
      %p351 = scmp.lt.s32.totalorder %s26, 1
      %s352 = scalar_select %p351, %s26, 1
      %p353 = scmp.lt.s32.totalorder %s350, 1
      %s354 = scalar_select %p353, %s350, 1
      %s355 = smul.addr %s352, 2
      %s356 = sadd.s32 %s354, %s355
      %s357 = smul.addr %s356, 4
      %s358 = scalar_lea.vmem %s0, %s357
      %p359 = pneg %p57
      %p360 = pneg %p54
      %s361 = smul.u32 2, %s27
      %p362 = scmp.lt.s32.totalorder %s26, 1
      %s363 = scalar_select %p362, %s26, 1
      %p364 = scmp.lt.s32.totalorder %s361, 1
      %s365 = scalar_select %p364, %s361, 1
      %s366 = smul.addr %s363, 2
      %s367 = sadd.s32 %s365, %s366
      %s368 = smul.addr %s367, 4
      %s369 = scalar_lea.vmem %s1, %s368
      %p370 = pneg %p85
      %p371 = pneg %p82
      %s372 = smul.u32 2, %s27
      %p373 = scmp.lt.s32.totalorder %s26, 1
      %s374 = scalar_select %p373, %s26, 1
      %p375 = scmp.lt.s32.totalorder %s372, 1
      %s376 = scalar_select %p375, %s372, 1
      %s377 = smul.addr %s374, 2
      %s378 = sadd.s32 %s376, %s377
      %s379 = smul.addr %s378, 4
      %s380 = scalar_lea.vmem %s2, %s379
      %p381 = pneg %p113
      %p382 = pneg %p110
      %p383 = pneg %p134
      %p384 = pneg %p131
      %p385 = pneg %p155
      %p386 = pneg %p152
      %p387 = pneg %p176
      %p388 = pneg %p173
      %p389 = pneg %p197
      %p390 = pneg %p194
      %p391 = pneg %p218
      %p392 = pneg %p215
      %p393 = pneg %p239
      %p394 = pneg %p236
      %p395 = pneg %p267
      %p396 = pneg %p264
      %s397 = smul.u32 2, %s27
      %p398 = scmp.lt.s32.totalorder %s26, 1
      %s399 = scalar_select %p398, %s26, 1
      %p400 = scmp.lt.s32.totalorder %s397, 1
      %s401 = scalar_select %p400, %s397, 1
      %s402 = smul.addr %s399, 2
      %s403 = sadd.s32 %s401, %s402
      %s404 = smul.addr %s403, 4
      %s405 = scalar_lea.vmem %s9, %s404
      %s406 = smul.u32 2, %s27
      %p407 = scmp.lt.s32.totalorder %s26, 1
      %s408 = scalar_select %p407, %s26, 1
      %p409 = scmp.lt.s32.totalorder %s406, 1
      %s410 = scalar_select %p409, %s406, 1
      %s411 = smul.addr %s408, 2
      %s412 = sadd.s32 %s410, %s411
      %s413 = smul.addr %s412, 4
      %s414 = scalar_lea.vmem %s0, %s413
      %s415 = smul.u32 2, %s27
      %s416 = smul.u32 2, %s27
      %p417 = scmp.lt.s32.totalorder %s26, 1
      %s418 = scalar_select %p417, %s26, 1
      %p419 = scmp.lt.s32.totalorder %s416, 1
      %s420 = scalar_select %p419, %s416, 1
      %s421 = smul.addr %s418, 2
      %s422 = sadd.s32 %s420, %s421
      %s423 = smul.addr %s422, 4
      %s424 = scalar_lea.vmem %s1, %s423
      %s425 = smul.u32 2, %s27
      %s426 = smul.u32 2, %s27
      %p427 = scmp.lt.s32.totalorder %s26, 1
      %s428 = scalar_select %p427, %s26, 1
      %p429 = scmp.lt.s32.totalorder %s426, 1
      %s430 = scalar_select %p429, %s426, 1
      %s431 = smul.addr %s428, 2
      %s432 = sadd.s32 %s430, %s431
      %s433 = smul.addr %s432, 4
      %s434 = scalar_lea.vmem %s2, %s433
      %s435 = smul.u32 2, %s27
      %s436 = smul.u32 2, %s27
      %p437 = scmp.lt.s32.totalorder %s26, 1
      %s438 = scalar_select %p437, %s26, 1
      %p439 = scmp.lt.s32.totalorder %s436, 1
      %s440 = scalar_select %p439, %s436, 1
      %s441 = smul.addr %s438, 2
      %s442 = sadd.s32 %s440, %s441
      %s443 = smul.addr %s442, 4
      %s444 = scalar_lea.vmem %s9, %s443
      %s445 = smul.u32 2, %s27
      %v446 = vld [vmem:[%s414] sm:$0xff]
      %v447 = vld [vmem:[%s424] sm:$0xff]
      %v448 = vld [vmem:[%s434] sm:$0xff]
      %v449 = vld [vmem:[%s3] sm:$0xff]
      %v450 = vld [vmem:[%s4] sm:$0xff]
      %v452 = vcombine.high %v447, %v447
      %vm453 = vcmask 31744
      %v455 = vsel %vm453, %v450, 0
      %vm457 = vcmask 1043456
      %v458 = vsel %vm457, %v447, 0
      %v460 = vsel %vm457, %v452, 0
      %462 = vmatprep.subr.mxu0 0.0
      %463 = vmatpush1.msra.mxu0 0.0
      %464 = vmatprep.subr.mxu0 0.0
      %465 = vmatpush1.msra.mxu0 0.0
      %466 = vmatprep.subr.mxu0 0.0
      %467 = vmatpush1.msra.mxu0 0.0
      %468 = vmatprep.subr.mxu0 0.0
      %469 = vmatpush1.msra.mxu0 0.0
      %470 = vmatprep.subr.mxu0 0.0
      %471 = vmatpush1.msra.mxu0 0.0
      %472 = vmatprep.subr.mxu0 0.0
      %473 = vmatpush1.msra.mxu0 0.0
      %474 = vmatprep.subr.mxu0 0.0
      %475 = vmatpush1.msra.mxu0 0.0
      %476 = vmatprep.subr.mxu0 0.0
      %477 = vmatpush1.msra.mxu0 0.0
      %478 = vmatprep.subr.mxu0 0.0
      %479 = vmatpush1.msra.mxu0 0.0
      %480 = vmatprep.subr.mxu0 0.0
      %481 = vmatpush1.msra.mxu0 0.0
      %482 = vmatprep.subr.mxu0 0.0
      %483 = vmatpush1.msra.mxu0 0.0
      %484 = vmatprep.subr.mxu0 0.0
      %485 = vmatpush1.msra.mxu0 0.0
      %486 = vmatprep.subr.mxu0 0.0
      %487 = vmatpush1.msra.mxu0 0.0
      %488 = vmatprep.subr.mxu0 0.0
      %489 = vmatpush1.msra.mxu0 0.0
      %490 = vmatprep.subr.mxu0 0.0
      %491 = vmatpush1.msra.mxu0 0.0
      %492 = vmatprep.subr.mxu0 %v460
      %493 = vmatpush1.msra.mxu0 %v458
      %494 = vmatprep.subr.mxu0 0.0
      %495 = vmatpush2.msra.mxu0 0.0
      %496 = vmatprep.subr.mxu0 0.0
      %497 = vmatpush2.msra.mxu0 0.0
      %498 = vmatprep.subr.mxu0 0.0
      %499 = vmatpush2.msra.mxu0 0.0
      %500 = vmatprep.subr.mxu0 0.0
      %501 = vmatpush2.msra.mxu0 0.0
      %502 = vmatprep.subr.mxu0 0.0
      %503 = vmatpush2.msra.mxu0 0.0
      %504 = vmatprep.subr.mxu0 0.0
      %505 = vmatpush2.msra.mxu0 0.0
      %506 = vmatprep.subr.mxu0 0.0
      %507 = vmatpush2.msra.mxu0 0.0
      %508 = vmatprep.subr.mxu0 0.0
      %509 = vmatpush2.msra.mxu0 0.0
      %510 = vmatprep.subr.mxu0 0.0
      %511 = vmatpush2.msra.mxu0 0.0
      %512 = vmatprep.subr.mxu0 0.0
      %513 = vmatpush2.msra.mxu0 0.0
      %514 = vmatprep.subr.mxu0 0.0
      %515 = vmatpush2.msra.mxu0 0.0
      %516 = vmatprep.subr.mxu0 0.0
      %517 = vmatpush2.msra.mxu0 0.0
      %518 = vmatprep.subr.mxu0 0.0
      %519 = vmatpush2.msra.mxu0 0.0
      %520 = vmatprep.subr.mxu0 0.0
      %521 = vmatpush2.msra.mxu0 0.0
      %522 = vmatprep.subr.mxu0 0.0
      %523 = vmatpush2.msra.mxu0 0.0
      %524 = vmatprep.subr.mxu0 0.0
      %525 = vmatpush2.msra.mxu0 0.0
      %526 = vmatprep.mubr.f32.mxu0 0.0
      %527 = vmatmul.mubr.f32.gmra.mxu0 %v455
      %v528 = vpop.f32.mrf.mxu0
      %v529 = vadd.f32 0.0, %v528
      %v530 = vpop.f32.mrf.mxu0
      %v531 = vadd.f32 0.0, %v530
      %532 = vdwg.mxu0
      %v534 = vcombine.high %v446, %v446
      %v536 = vsel %vm453, %v449, 0
      %v538 = vsel %vm457, %v446, 0
      %v540 = vsel %vm457, %v534, 0
      %542 = vmatprep.subr.mxu0 0.0
      %543 = vmatpush1.msra.mxu0 0.0
      %544 = vmatprep.subr.mxu0 0.0
      %545 = vmatpush1.msra.mxu0 0.0
      %546 = vmatprep.subr.mxu0 0.0
      %547 = vmatpush1.msra.mxu0 0.0
      %548 = vmatprep.subr.mxu0 0.0
      %549 = vmatpush1.msra.mxu0 0.0
      %550 = vmatprep.subr.mxu0 0.0
      %551 = vmatpush1.msra.mxu0 0.0
      %552 = vmatprep.subr.mxu0 0.0
      %553 = vmatpush1.msra.mxu0 0.0
      %554 = vmatprep.subr.mxu0 0.0
      %555 = vmatpush1.msra.mxu0 0.0
      %556 = vmatprep.subr.mxu0 0.0
      %557 = vmatpush1.msra.mxu0 0.0
      %558 = vmatprep.subr.mxu0 0.0
      %559 = vmatpush1.msra.mxu0 0.0
      %560 = vmatprep.subr.mxu0 0.0
      %561 = vmatpush1.msra.mxu0 0.0
      %562 = vmatprep.subr.mxu0 0.0
      %563 = vmatpush1.msra.mxu0 0.0
      %564 = vmatprep.subr.mxu0 0.0
      %565 = vmatpush1.msra.mxu0 0.0
      %566 = vmatprep.subr.mxu0 0.0
      %567 = vmatpush1.msra.mxu0 0.0
      %568 = vmatprep.subr.mxu0 0.0
      %569 = vmatpush1.msra.mxu0 0.0
      %570 = vmatprep.subr.mxu0 0.0
      %571 = vmatpush1.msra.mxu0 0.0
      %572 = vmatprep.subr.mxu0 %v540
      %573 = vmatpush1.msra.mxu0 %v538
      %574 = vmatprep.subr.mxu0 0.0
      %575 = vmatpush2.msra.mxu0 0.0
      %576 = vmatprep.subr.mxu0 0.0
      %577 = vmatpush2.msra.mxu0 0.0
      %578 = vmatprep.subr.mxu0 0.0
      %579 = vmatpush2.msra.mxu0 0.0
      %580 = vmatprep.subr.mxu0 0.0
      %581 = vmatpush2.msra.mxu0 0.0
      %582 = vmatprep.subr.mxu0 0.0
      %583 = vmatpush2.msra.mxu0 0.0
      %584 = vmatprep.subr.mxu0 0.0
      %585 = vmatpush2.msra.mxu0 0.0
      %586 = vmatprep.subr.mxu0 0.0
      %587 = vmatpush2.msra.mxu0 0.0
      %588 = vmatprep.subr.mxu0 0.0
      %589 = vmatpush2.msra.mxu0 0.0
      %590 = vmatprep.subr.mxu0 0.0
      %591 = vmatpush2.msra.mxu0 0.0
      %592 = vmatprep.subr.mxu0 0.0
      %593 = vmatpush2.msra.mxu0 0.0
      %594 = vmatprep.subr.mxu0 0.0
      %595 = vmatpush2.msra.mxu0 0.0
      %596 = vmatprep.subr.mxu0 0.0
      %597 = vmatpush2.msra.mxu0 0.0
      %598 = vmatprep.subr.mxu0 0.0
      %599 = vmatpush2.msra.mxu0 0.0
      %600 = vmatprep.subr.mxu0 0.0
      %601 = vmatpush2.msra.mxu0 0.0
      %602 = vmatprep.subr.mxu0 0.0
      %603 = vmatpush2.msra.mxu0 0.0
      %604 = vmatprep.subr.mxu0 0.0
      %605 = vmatpush2.msra.mxu0 0.0
      %606 = vmatprep.mubr.f32.mxu0 0.0
      %607 = vmatmul.mubr.f32.gmra.mxu0 %v536
      %v608 = vpop.f32.mrf.mxu0
      %v609 = vadd.f32 %v529, %v608
      %v610 = vpop.f32.mrf.mxu0
      %v611 = vadd.f32 %v531, %v610
      %612 = vdwg.mxu0
      %v613 = vld [vmem:[%s5] sm:$0xff]
      %v615 = vcombine.high %v448, %v448
      %v617 = vsel %vm453, %v613, 0
      %v619 = vsel %vm457, %v448, 0
      %v621 = vsel %vm457, %v615, 0
      %623 = vmatprep.subr.mxu0 0.0
      %624 = vmatpush1.msra.mxu0 0.0
      %625 = vmatprep.subr.mxu0 0.0
      %626 = vmatpush1.msra.mxu0 0.0
      %627 = vmatprep.subr.mxu0 0.0
      %628 = vmatpush1.msra.mxu0 0.0
      %629 = vmatprep.subr.mxu0 0.0
      %630 = vmatpush1.msra.mxu0 0.0
      %631 = vmatprep.subr.mxu0 0.0
      %632 = vmatpush1.msra.mxu0 0.0
      %633 = vmatprep.subr.mxu0 0.0
      %634 = vmatpush1.msra.mxu0 0.0
      %635 = vmatprep.subr.mxu0 0.0
      %636 = vmatpush1.msra.mxu0 0.0
      %637 = vmatprep.subr.mxu0 0.0
      %638 = vmatpush1.msra.mxu0 0.0
      %639 = vmatprep.subr.mxu0 0.0
      %640 = vmatpush1.msra.mxu0 0.0
      %641 = vmatprep.subr.mxu0 0.0
      %642 = vmatpush1.msra.mxu0 0.0
      %643 = vmatprep.subr.mxu0 0.0
      %644 = vmatpush1.msra.mxu0 0.0
      %645 = vmatprep.subr.mxu0 0.0
      %646 = vmatpush1.msra.mxu0 0.0
      %647 = vmatprep.subr.mxu0 0.0
      %648 = vmatpush1.msra.mxu0 0.0
      %649 = vmatprep.subr.mxu0 0.0
      %650 = vmatpush1.msra.mxu0 0.0
      %651 = vmatprep.subr.mxu0 0.0
      %652 = vmatpush1.msra.mxu0 0.0
      %653 = vmatprep.subr.mxu0 %v621
      %654 = vmatpush1.msra.mxu0 %v619
      %655 = vmatprep.subr.mxu0 0.0
      %656 = vmatpush2.msra.mxu0 0.0
      %657 = vmatprep.subr.mxu0 0.0
      %658 = vmatpush2.msra.mxu0 0.0
      %659 = vmatprep.subr.mxu0 0.0
      %660 = vmatpush2.msra.mxu0 0.0
      %661 = vmatprep.subr.mxu0 0.0
      %662 = vmatpush2.msra.mxu0 0.0
      %663 = vmatprep.subr.mxu0 0.0
      %664 = vmatpush2.msra.mxu0 0.0
      %665 = vmatprep.subr.mxu0 0.0
      %666 = vmatpush2.msra.mxu0 0.0
      %667 = vmatprep.subr.mxu0 0.0
      %668 = vmatpush2.msra.mxu0 0.0
      %669 = vmatprep.subr.mxu0 0.0
      %670 = vmatpush2.msra.mxu0 0.0
      %671 = vmatprep.subr.mxu0 0.0
      %672 = vmatpush2.msra.mxu0 0.0
      %673 = vmatprep.subr.mxu0 0.0
      %674 = vmatpush2.msra.mxu0 0.0
      %675 = vmatprep.subr.mxu0 0.0
      %676 = vmatpush2.msra.mxu0 0.0
      %677 = vmatprep.subr.mxu0 0.0
      %678 = vmatpush2.msra.mxu0 0.0
      %679 = vmatprep.subr.mxu0 0.0
      %680 = vmatpush2.msra.mxu0 0.0
      %681 = vmatprep.subr.mxu0 0.0
      %682 = vmatpush2.msra.mxu0 0.0
      %683 = vmatprep.subr.mxu0 0.0
      %684 = vmatpush2.msra.mxu0 0.0
      %685 = vmatprep.subr.mxu0 0.0
      %686 = vmatpush2.msra.mxu0 0.0
      %687 = vmatprep.mubr.f32.mxu0 0.0
      %688 = vmatmul.mubr.f32.gmra.mxu0 %v617
      %v689 = vpop.f32.mrf.mxu0
      %v690 = vadd.f32 0.0, %v689
      %v691 = vpop.f32.mrf.mxu0
      %v692 = vadd.f32 0.0, %v691
      %693 = vdwg.mxu0
      %v694 = vadd.f32 %v609, %v690
      %v695 = vadd.f32 %v611, %v692
      %v696 = vld [vmem:[%s6] sm:$0xff]
      %698 = vset.pattern.permute.xlu0 0
      %699 = vperm.xlu0 %698, %v696
      %v700 = vpop.permute.xlu0 %699
      %v702 = vadd.f32 %v694, %v700
      %v703 = vadd.f32 %v695, %v700
      %v704 = vmax.f32 %v702, 0.0
      %v705 = vmax.f32 %v703, 0.0
      %v706 = vld [vmem:[%s7] sm:$0xff]
      %708 = vset.pattern.permute.xlu0 0
      %709 = vperm.xlu0 %708, %v706
      %v710 = vpop.permute.xlu0 %709
      %v712 = vmul.f32 %v704, %v710
      %v713 = vmul.f32 %v705, %v710
      %v714 = vrot.slane %v712, 4
      %v715 = vadd.f32 %v712, %v714
      %v716 = vrot.slane %v715, 2
      %v717 = vadd.f32 %v715, %v716
      %v718 = vrot.slane %v717, 1
      %v719 = vadd.f32 %v717, %v718
      %v720 = vrot.slane %v713, 4
      %v721 = vadd.f32 %v713, %v720
      %v722 = vrot.slane %v721, 2
      %v723 = vadd.f32 %v721, %v722
      %v724 = vrot.slane %v723, 1
      %v725 = vadd.f32 %v723, %v724
      %v726 = vld [vmem:[#allocation2] sm:$0x1]
      %728 = vset.pattern.permute.xlu0 0
      %729 = vperm.xlu0 %728, %v726
      %v730 = vpop.permute.xlu0 %729
      %v732 = vlaneseq
      %v733 = vshrl.u32 %v732, 7
      %v734 = vsub.s32 0, %v733
      %v735 = vrot.slane %v730, %v734
      %v736 = vadd.f32 %v719, %v735
      %v737 = vadd.f32 %v725, %v735
      %v738 = vsub.f32 0.0, %v736
      %v739 = vsub.f32 0.0, %v737
      %v740 = vmul.f32 %v738, 1.442695
      %v741 = vpow.pop %v740
      %v742 = vmul.f32 %v739, 1.442695
      %v743 = vpow.pop %v742
      %v744 = vadd.f32 %v741, 1.0
      %v745 = vadd.f32 %v743, 1.0
      %v746 = vrcp.pop %v744
      %v747 = vrcp.pop %v745
      %v750 = vcombine.low %v746, %v747
      %v752 = vmul.f32 %v447, %v750
      %753 = vst [vmem:[%s444] sm:$0xff] %v752
      %s754 = smul.u32 2, %s27
      %p755 = scmp.lt.s32.totalorder %s26, 1
      %s756 = scalar_select %p755, %s26, 1
      %p757 = scmp.lt.s32.totalorder %s754, 1
      %s758 = scalar_select %p757, %s754, 1
      %s759 = smul.addr %s756, 2
      %s760 = sadd.s32 %s758, %s759
      %s761 = smul.addr %s760, 4
      %s762 = scalar_lea.vmem %s9, %s761
      // Predicated region
      $region57: #{channel_attention.1} parent=55 // pred_check
        %p763 = pneg %p264
      $region58: #{channel_attention.1} parent=55 // pred_check_branch
        %765 = sbr.rel (%p763) target = $region60
      $region59: #{channel_attention.1} parent=55 // pred_region
        %s766 = smul.u32 2, %s27
      $region60: #{channel_attention.1} parent=55 // pred_fallthru
        _
    $region56: #{channel_attention.1} parent=5 // pred_fallthru
      _
    %p767 = scmp.le.s32.totalorder 2, %s17
    // Predicated region
    $region61: #{channel_attention.1} parent=5 // pred_check
      %p768 = pneg %p767
    $region62: #{channel_attention.1} parent=5 // pred_check_branch
      %770 = sbr.rel (%p768) target = $region64
    $region63: #{channel_attention.1} parent=5 // pred_region
      %s771 = ssub.s32 %s17, 2
      // Predicated region
      $region65: #{channel_attention.1} parent=63 // pred_check
        %p772 = pneg %p270
      $region66: #{channel_attention.1} parent=63 // pred_check_branch
        %774 = sbr.rel (%p772) target = $region68
      $region67: #{channel_attention.1} parent=63 // pred_region
        %s775 = smul.u32 2, %s29
        %p776 = scmp.lt.s32.totalorder %s28, 1
        %s777 = scalar_select %p776, %s28, 1
        %p778 = scmp.lt.s32.totalorder %s775, 1
        %s779 = scalar_select %p778, %s775, 1
        %s780 = smul.addr %s777, 2
        %s781 = sadd.s32 %s779, %s780
        %s782 = smul.addr %s781, 4
        %s783 = scalar_lea.vmem %s9, %s782
      $region68: #{channel_attention.1} parent=63 // pred_fallthru
        _
    $region64: #{channel_attention.1} parent=5 // pred_fallthru
      _
  $region6: #{channel_attention.1} parent=0 // loop_footer
    %s21 = sadd.s32 1, %s17
  $region7: #{channel_attention.1} parent=0 // loop_footer_branch
    %16 = sbr.rel target = $region3
  $region8: #{channel_attention.1} parent=0 // loop_exit
    _

</llo_original>
